<compile_context>
chip_gen: v6e
topology: v6e:2x2x1
jax: 0.10.0
libtpu: 0.0.40
codegen_flags: <defaults>
</compile_context>

<pallas_src>
import numpy as np
import jax
import jax.numpy as jnp
from jax.experimental import pallas as pl
from jax.experimental.pallas import tpu as pltpu


def _round_up(x: int, m: int) -> int:
    return ((x + m - 1) // m) * m


# ---------------------------------------------------------------------------
# Pallas kernel
# ---------------------------------------------------------------------------
def _score_kernel(a_ref, nxt_ref, ones_ref, o_ref, bnd_ref):
    """One row-tile of fused scores.

    a_ref:    (TN, D)      rows [i*TN, (i+1)*TN) of rep_with_head (input dtype)
    nxt_ref:  (SUB, D)     first SUB rows of the NEXT tile (SUB = sublane packing)
    ones_ref: (D, 1)  f32  resident all-ones vector for the MXU row reduction
    o_ref:    (TN, 1) f32  per-row scores:  o[k] = <row k, row k+1>
    bnd_ref:  (2*SUB, D)   tiny boundary staging scratch (input dtype)
    """
    tn = a_ref.shape[0]
    sub = nxt_ref.shape[0]
    nbulk = tn - sub

    ones = ones_ref[...]                                    # (D, 1) f32, stays resident

    # Stage ONLY the boundary rows contiguously: [last SUB rows of this tile ; head of
    # the next tile].  (The previous version staged the whole tile, costing an extra
    # vst + vld per data vreg on the single/limited store slot.)
    bnd_ref[0:sub, :] = a_ref[nbulk:tn, :]
    bnd_ref[sub:2 * sub, :] = nxt_ref[...]

    # Bulk rows [0, TN-SUB): the "+1 row" shifted operand lives entirely inside this
    # tile, so it is a plain sublane-offset-1 read of the resident input block.  The
    # row reduction is pushed through the otherwise-idle MXU (ones matvec) instead of
    # an XLU lane reduce, keeping the kernel on the HBM roofline.
    prod = (a_ref[0:nbulk, :].astype(jnp.float32)
            * a_ref[1:nbulk + 1, :].astype(jnp.float32))
    o_ref[0:nbulk, :] = jnp.dot(prod, ones, preferred_element_type=jnp.float32)

    # Last SUB rows: the shifted operand crosses the tile boundary -> read via scratch.
    tprod = (bnd_ref[0:sub, :].astype(jnp.float32)
             * bnd_ref[1:sub + 1, :].astype(jnp.float32))
    o_ref[nbulk:tn, :] = jnp.dot(tprod, ones, preferred_element_type=jnp.float32)

    # NOTE: rows of a partial last grid block beyond N hold stale VMEM data; they only
    # write output rows that Pallas clips on copy-out.  Row N-1's shifted operand is
    # also meaningless, but the global last row is ALWAYS a doc end and is overwritten
    # in the wrapper (see score_net_forward) -- do not change the concat order.
    # TODO(synk): for D < 128, pack 128/D rows per vreg (lane-dense) before the kernel.
    # TODO(synk): lane-dense (TN//128, 128) output slab if the vst slot binds on v5e.


# ---------------------------------------------------------------------------
# Tiling / VMEM sizing helpers
# ---------------------------------------------------------------------------
def _vmem_limits():
    """Generation-aware VMEM limits (v7x: 64 MiB/TC physical; v5e/v6e: 128 MiB)."""
    try:
        cap = int(pltpu.get_tpu_info().vmem_capacity_bytes)
    except Exception:
        cap = 64 << 20                        # conservative fallback (smallest = v7x)
    limit = min(cap // 2, 64 << 20)           # 32 MiB on v7x, 64 MiB on v5e/v6e
    budget = limit // 2                       # headroom for double-buffers & internal scratch
    return limit, budget


def _choose_tile_rows(n: int, d: int, itemsize: int, sub: int,
                      vmem_budget_bytes: int) -> int:
    d_pad = _round_up(d, 128)
    # Per-tile-row VMEM bill:
    #   main input block, double-buffered .................. 2 * d_pad * itemsize
    #   (TN,1) f32 output block, lane-padded to 128, x2 .... 2 * 128 * 4
    #   live f32 temporaries (casts / product) ............. ~8 * d_pad
    bytes_per_row = 2 * d_pad * itemsize + 1024 + 8 * d_pad
    tn = vmem_budget_bytes // max(bytes_per_row, 1)
    tn = min(tn, 2048)                                  # amortize ~0.35us/step grid overhead
    tn = min(tn, _round_up(pl.cdiv(n, 8), sub))         # >=8 grid steps -> >=4 per TC on v7x
    return max(2 * sub, (tn // sub) * sub)


def _fused_row_scores(rep_with_head, *, tile_rows=None):
    """score[n] = <rwh[n], rwh[n+1]> for every row (doc-end rows fixed up by the caller)."""
    n, d = rep_with_head.shape
    dtype = rep_with_head.dtype
    itemsize = jnp.dtype(dtype).itemsize
    sub = max(8, 32 // itemsize)              # sublane packing: 8 f32, 16 bf16, 32 int8
    vmem_limit, budget = _vmem_limits()

    if tile_rows is None:
        tn = _choose_tile_rows(n, d, itemsize, sub, budget)
    else:
        tn = max(2 * sub, (int(tile_rows) // sub) * sub)

    nblocks = pl.cdiv(n, tn)                  # no padding: partial last block is fine
    step_blocks = tn // sub
    last_blk = (n - 1) // sub                 # clamp target for the lookahead fetch

    ones = jnp.ones((d, 1), jnp.float32)

    out = pl.pallas_call(
        _score_kernel,
        out_shape=jax.ShapeDtypeStruct((n, 1), jnp.float32),
        grid_spec=pltpu.PrefetchScalarGridSpec(
            num_scalar_prefetch=0,
            grid=(nblocks,),
            in_specs=[
                # main tile of rep_with_head
                pl.BlockSpec((tn, d), lambda i: (i, 0)),
                # first SUB rows of the NEXT tile (clamped at the end; the clamped value
                # only ever pairs with clipped rows or the global last row, which is a
                # doc end and gets fixed up in the wrapper)
                pl.BlockSpec((sub, d),
                             lambda i: (jnp.minimum((i + 1) * step_blocks, last_blk), 0)),
                # resident ones vector for the MXU row reduction
                pl.BlockSpec((d, 1), lambda i: (0, 0)),
            ],
            out_specs=pl.BlockSpec((tn, 1), lambda i: (i, 0)),
            scratch_shapes=[pltpu.VMEM((2 * sub, d), dtype)],
        ),
        compiler_params=pltpu.CompilerParams(
            dimension_semantics=("parallel",),
            vmem_limit_bytes=int(vmem_limit),
        ),
    )(rep_with_head, rep_with_head, ones)
    return out[:, 0]                          # f32 (n,)


# ---------------------------------------------------------------------------
# Score_Net forward (dot path) + parameter init
# ---------------------------------------------------------------------------
def init_score_net_params(dim_in, key):
    """Matches init_para(): uniform(-1/sqrt(D), 1/sqrt(D)) for head and tail."""
    scope = float(np.sqrt(1.0 / dim_in))
    k_head, k_tail = jax.random.split(key)
    head = jax.random.uniform(k_head, (1, dim_in), jnp.float32, -scope, scope)
    tail = jax.random.uniform(k_tail, (1, dim_in), jnp.float32, -scope, scope)
    return head, tail


def score_net_forward(rep_srcs, head, tail, *, tile_rows=None, min_pallas_elems=65536):
    """score_type='dot' path of Score_Net.forward (Dropout in eval mode = identity)."""
    # TODO(synk): training-mode Dropout (in-kernel pltpu.prng_*) and the 'bilinear'
    # score path are not exercised by the default config; layernorm is unused in forward.
    docs = list(rep_srcs)
    assert len(docs) >= 1, "fused kernel relies on the global last row being a doc end"
    d = head.shape[-1]
    rep_with_head = jnp.concatenate([p for r in docs for p in (head, r)], axis=0)
    n = rep_with_head.shape[0]

    use_pallas = (tile_rows is not None) or (n * d >= min_pallas_elems)
    if not use_pallas:
        # Small-problem fallback: a fused XLA elementwise+reduce beats kernel launch cost.
        rep_with_tail = jnp.concatenate([p for r in docs for p in (r, tail)], axis=0)
        s = jnp.sum(rep_with_head.astype(jnp.float32) * rep_with_tail.astype(jnp.float32),
                    axis=-1)
        return s.astype(rep_with_head.dtype)

    # Hot path: plain shifted-row dot products from the kernel ...
    s = _fused_row_scores(rep_with_head, tile_rows=tile_rows)            # f32 (n,)
    # ... then fix up the O(#docs) per-document last rows, which pair with `tail`.
    ends = np.cumsum([r.shape[0] + 1 for r in docs]) - 1
    ends_idx = jnp.asarray(ends, jnp.int32)
    end_scores = jnp.sum(rep_with_head[ends_idx].astype(jnp.float32)
                         * tail.astype(jnp.float32), axis=-1)
    s = s.at[ends_idx].set(end_scores)
    return s.astype(rep_with_head.dtype)


def _reference_scores(rep_srcs, head, tail):
    """Pure-JAX reference identical to the PyTorch dot path."""
    rwh = jnp.concatenate([p for r in rep_srcs for p in (head, r)], axis=0)
    rwt = jnp.concatenate([p for r in rep_srcs for p in (r, tail)], axis=0)
    s = jnp.sum(rwh.astype(jnp.float32) * rwt.astype(jnp.float32), axis=-1)
    return s.astype(rwh.dtype)


# ---------------------------------------------------------------------------
# Tests
# ---------------------------------------------------------------------------
if __name__ == "__main__":
    key = jax.random.PRNGKey(0)
    k_param, k0, k1, k2, k3, k4 = jax.random.split(key, 6)

    # --- tiny case (typical module usage): plain-JAX fallback path -----------
    dim_small = 32
    head_s, tail_s = init_score_net_params(dim_small, k_param)
    rep_small = [jax.random.normal(k0, (3, dim_small), jnp.float32),
                 jax.random.normal(k1, (4, dim_small), jnp.float32)]
    s_small = jax.block_until_ready(score_net_forward(rep_small, head_s, tail_s))
    ref_small = _reference_scores(rep_small, head_s, tail_s)
    assert s_small.shape == (9,)
    assert jnp.allclose(s_small, ref_small, atol=1e-5, rtol=1e-5)

    # --- larger case: exercises the fused Pallas kernel ----------------------
    # (partial last block, doc boundaries inside tiles, cross-tile +1 row fetch)
    dim_big = 128
    head_b, tail_b = init_score_net_params(dim_big, k_param)
    rep_big = [jax.random.normal(k2, (413, dim_big), jnp.float32),
               jax.random.normal(k3, (357, dim_big), jnp.float32),
               jax.random.normal(k4, (229, dim_big), jnp.float32)]
    ref_big = _reference_scores(rep_big, head_b, tail_b)

    # Tolerance allows for the MXU's multi-pass f32/bf16 matmul decomposition of the
    # ones-vector row reduction; semantic bugs would show up as O(10) deviations.
    s_big = jax.block_until_ready(score_net_forward(rep_big, head_b, tail_b))
    assert s_big.shape == (413 + 357 + 229 + 3,)
    assert jnp.allclose(s_big, ref_big, atol=1e-1, rtol=1e-2)

    # Same input, forced small tiles: many grid steps & cross-tile boundary fixups.
    s_tiled = jax.block_until_ready(
        score_net_forward(rep_big, head_b, tail_b, tile_rows=64))
    assert jnp.allclose(s_tiled, ref_big, atol=1e-1, rtol=1e-2)

    # bf16 inputs fed straight through the same kernel (f32 product + accumulation inside).
    rep_bf = [r.astype(jnp.bfloat16) for r in rep_big]
    head_bf = head_b.astype(jnp.bfloat16)
    tail_bf = tail_b.astype(jnp.bfloat16)
    s_bf = jax.block_until_ready(score_net_forward(rep_bf, head_bf, tail_bf))
    ref_bf = _reference_scores(rep_bf, head_bf, tail_bf)
    assert jnp.allclose(s_bf.astype(jnp.float32), ref_bf.astype(jnp.float32),
                        atol=0.5, rtol=0.05)

    print("KERNEL_OK")
</pallas_src>

<mosaic_0001>
module attributes {stable_mosaic.version = 11 : i64} {
  func.func @_score_kernel(%arg0: i32, %arg1: memref<128x128xf32, #tpu.memory_space<vmem>>, %arg2: memref<8x128xf32, #tpu.memory_space<vmem>>, %arg3: memref<128x1xf32, #tpu.memory_space<vmem>>, %arg4: memref<128x1xf32, #tpu.memory_space<vmem>>, %arg5: memref<16x128xf32, #tpu.memory_space<vmem>>) attributes {dimension_semantics = [#tpu.dimension_semantics<parallel>], iteration_bounds = array<i64: 8>, scalar_prefetch = 0 : i64, scratch_operands = 1 : i64, tpu.core_type = #tpu.core_type<tc>, window_params = [{transform_indices = @transform_0, window_bounds = array<i64: 128, 128>}, {transform_indices = @transform_1, window_bounds = array<i64: 8, 128>}, {pipeline_mode = #tpu.pipeline_mode<synchronous>, transform_indices = @transform_2, window_bounds = array<i64: 128, 1>}, {transform_indices = @transform_3, window_bounds = array<i64: 128, 1>}]} {
    %c0 = arith.constant 0 : index
    %c0_0 = arith.constant 0 : index
    %0 = vector.load %arg3[%c0, %c0_0] : memref<128x1xf32, #tpu.memory_space<vmem>>, vector<128x1xf32>
    %c120 = arith.constant 120 : index
    %c0_1 = arith.constant 0 : index
    %1 = vector.load %arg1[%c120, %c0_1] : memref<128x128xf32, #tpu.memory_space<vmem>>, vector<8x128xf32>
    %c0_2 = arith.constant 0 : index
    %c0_3 = arith.constant 0 : index
    %2 = vector.load %arg5[%c0_2, %c0_3] : memref<16x128xf32, #tpu.memory_space<vmem>>, vector<8x128xf32>
    tpu.vector_store %arg5[%c0_2, %c0_3], %1 {strides = array<i32>} : memref<16x128xf32, #tpu.memory_space<vmem>>, vector<8x128xf32>,
    %c0_4 = arith.constant 0 : index
    %c0_5 = arith.constant 0 : index
    %3 = vector.load %arg2[%c0_4, %c0_5] : memref<8x128xf32, #tpu.memory_space<vmem>>, vector<8x128xf32>
    %c8 = arith.constant 8 : index
    %c0_6 = arith.constant 0 : index
    %4 = vector.load %arg5[%c8, %c0_6] : memref<16x128xf32, #tpu.memory_space<vmem>>, vector<8x128xf32>
    tpu.vector_store %arg5[%c8, %c0_6], %3 {strides = array<i32>} : memref<16x128xf32, #tpu.memory_space<vmem>>, vector<8x128xf32>,
    %c0_7 = arith.constant 0 : index
    %c0_8 = arith.constant 0 : index
    %5 = vector.load %arg1[%c0_7, %c0_8] : memref<128x128xf32, #tpu.memory_space<vmem>>, vector<120x128xf32>
    %c1 = arith.constant 1 : index
    %c0_9 = arith.constant 0 : index
    %6 = vector.load %arg1[%c1, %c0_9] : memref<128x128xf32, #tpu.memory_space<vmem>>, vector<120x128xf32>
    %7 = arith.mulf %5, %6 : vector<120x128xf32>
    %cst = arith.constant dense<0.000000e+00> : vector<120x1xf32>
    %8 = tpu.matmul %7, %0, %cst {dimension_numbers = #tpu.dot_dimension_numbers<[1], [0], [0], [1], [0, 0, 1, 1], [], []>} : vector<120x128xf32>, vector<128x1xf32>, vector<120x1xf32> -> vector<120x1xf32>
    %c0_10 = arith.constant 0 : index
    %c0_11 = arith.constant 0 : index
    %9 = vector.load %arg4[%c0_10, %c0_11] : memref<128x1xf32, #tpu.memory_space<vmem>>, vector<120x1xf32>
    tpu.vector_store %arg4[%c0_10, %c0_11], %8 {strides = array<i32>} : memref<128x1xf32, #tpu.memory_space<vmem>>, vector<120x1xf32>,
    %c0_12 = arith.constant 0 : index
    %c0_13 = arith.constant 0 : index
    %10 = vector.load %arg5[%c0_12, %c0_13] : memref<16x128xf32, #tpu.memory_space<vmem>>, vector<8x128xf32>
    %c1_14 = arith.constant 1 : index
    %c0_15 = arith.constant 0 : index
    %11 = vector.load %arg5[%c1_14, %c0_15] : memref<16x128xf32, #tpu.memory_space<vmem>>, vector<8x128xf32>
    %12 = arith.mulf %10, %11 : vector<8x128xf32>
    %cst_16 = arith.constant dense<0.000000e+00> : vector<8x1xf32>
    %13 = tpu.matmul %12, %0, %cst_16 {dimension_numbers = #tpu.dot_dimension_numbers<[1], [0], [0], [1], [0, 0, 1, 1], [], []>} : vector<8x128xf32>, vector<128x1xf32>, vector<8x1xf32> -> vector<8x1xf32>
    %c120_17 = arith.constant 120 : index
    %c0_18 = arith.constant 0 : index
    %14 = vector.load %arg4[%c120_17, %c0_18] : memref<128x1xf32, #tpu.memory_space<vmem>>, vector<8x1xf32>
    tpu.vector_store %arg4[%c120_17, %c0_18], %13 {strides = array<i32>} : memref<128x1xf32, #tpu.memory_space<vmem>>, vector<8x1xf32>,
    return
  }
  func.func @transform_0(%arg0: i32) -> (i32, i32) {
    %c0_i32 = arith.constant 0 : i32
    %c0_i32_0 = arith.constant 0 : i32
    return %arg0, %c0_i32 : i32, i32
  }
  func.func @transform_1(%arg0: i32) -> (i32, i32) {
    %c1_i32 = arith.constant 1 : i32
    %0 = arith.addi %arg0, %c1_i32 : i32
    %c16_i32 = arith.constant 16 : i32
    %1 = arith.muli %0, %c16_i32 : i32
    %c125_i32 = arith.constant 125 : i32
    %2 = arith.minsi %1, %c125_i32 : i32
    %c0_i32 = arith.constant 0 : i32
    %c0_i32_0 = arith.constant 0 : i32
    return %2, %c0_i32 : i32, i32
  }
  func.func @transform_2(%arg0: i32) -> (i32, i32) {
    %c0_i32 = arith.constant 0 : i32
    %c0_i32_0 = arith.constant 0 : i32
    %c0_i32_1 = arith.constant 0 : i32
    return %c0_i32, %c0_i32_0 : i32, i32
  }
  func.func @transform_3(%arg0: i32) -> (i32, i32) {
    %c0_i32 = arith.constant 0 : i32
    %c0_i32_0 = arith.constant 0 : i32
    return %arg0, %c0_i32 : i32, i32
  }
}

</mosaic_0001>

<llo_original>
// kernel: tpu_custom_call.1
$region0: #{tpu_custom_call.1}
  #allocation0 [shape = 'u32[]', space=smem, size = 0x4, offset = 0x4, fixed_abs, tag = 'smem constant byte address 0x4 - core index']
  #allocation1 [shape = 'u32[144,128]{1,0:T(1,128)}', space=vmem, size = 0x12000, scoped, tag = 'internal scratch']
  #allocation2 [shape = 'f32[16,128]{1,0:T(8,128)}', space=vmem, size = 0x2000, scoped, tag = 'scratch operand']
  %s0 = inlined_call_operand.hbm [shape: f32[1002,128], index: 0, kind: input, shape index: {}]
  %s1 = inlined_call_operand.hbm [shape: f32[1002,128], index: 1, kind: input, shape index: {}]
  %s2 = inlined_call_operand.vmem [shape: f32[128,1], index: 2, kind: input, shape index: {}]
  %s3 = inlined_call_operand.vmem [shape: f32[1002,1], index: 3, kind: output, shape index: {}]
  %s4 = sld [smem:[#allocation0]]
  $region101: #{tpu_custom_call.1} parent=0
    _
  %s6 = ssub.s32 1, %s4
  %s7 = scalar_select 0, %s6, %s4
  $region1: #{tpu_custom_call.1} parent=0
    #allocation3 [shape = 'u8[131072]{0}', space=vmem, size = 0x20000, scoped, tag = 'input window, operand 0']
    #allocation4 [shape = 's32[2]{0}', space=sflag, size = 0x8, scoped, tag = 'scoped memory for tpu_custom_call.1']
    #allocation5 [shape = 'u8[8192]{0}', space=vmem, size = 0x2000, scoped, tag = 'input window, operand 1']
    #allocation6 [shape = 's32[2]{0}', space=sflag, size = 0x8, scoped, tag = 'scoped memory for tpu_custom_call.1']
    #allocation7 [shape = 'u8[131072]{0}', space=vmem, size = 0x20000, scoped, tag = 'output window, operand 0']
    %8 = vsyncpa [#allocation4], 0
    %s9 = scalar_lea.sflag [#allocation4], 1
    %10 = vsyncpa %s9, 0
    %11 = vsyncpa [#allocation6], 0
    %s12 = scalar_lea.sflag [#allocation6], 1
    %13 = vsyncpa %s12, 0
    loop: start=0, step=1, limit=10
    $region2: #{tpu_custom_call.1} parent=1 // loop_pre_header
      _
    $region3: #{tpu_custom_call.1} parent=1 // loop_header
      %s15 = sphi 0, %s19
      %p16 = scmp.ge.s32.totalorder %s15, 10
      %s25 = sphi 0, %s27
      %s28 = sphi 0, %s25
      %s29 = sphi 0, %s28
      %s45 = sphi 0, %s29
      %s59 = sphi 0, %s61
      %s62 = sphi 0, %s59
      %s63 = sphi 0, %s62
      %s79 = sphi 0, %s63
      %s83 = sphi 0, %s83
      %s85 = sphi 0, %s83
      %s86 = sphi 0, %s85
      %s100 = sphi 0, %s86
      %s106 = sphi 0, %s108
      %s109 = sphi 0, %s106
      %s110 = sphi 0, %s109
      %s126 = sphi 0, %s110
    $region4: #{tpu_custom_call.1} parent=1 // loop_header_branch
      %18 = sbr.rel (%p16) target = $region8
    $region5: #{tpu_custom_call.1} parent=1 // loop_body
      %s20 = ssub.s32 %s15, 1
      %s21 = ssub.s32 %s15, 2
      %s22 = sadd.s32 %s15, 1
      %s23 = ssub.s32 %s15, %s22
      %p24 = scmp.eq.s32.totalorder %s23, 0
      %s26 = sadd.s32 %s25, 1
      %s27 = scalar_select %p24, %s25, %s26
      %p30 = pneg %p24
      %p31 = scmp.eq.s32.totalorder %s15, 7
      %p32 = por %p30, %p31
      %p33 = scmp.ne.s32.totalorder %s25, %s28
      %p34 = scmp.eq.s32.totalorder %s15, 0
      %p35 = por %p33, %p34
      %p36 = scmp.ne.s32.totalorder %s25, %s28
      %p37 = scmp.eq.s32.totalorder %s20, 7
      %p38 = por %p36, %p37
      %p39 = scmp.ne.s32.totalorder %s28, %s29
      %p40 = scmp.eq.s32.totalorder %s20, 0
      %p41 = por %p39, %p40
      %p42 = scmp.ne.s32.totalorder %s28, %s29
      %p43 = scmp.eq.s32.totalorder %s21, 7
      %p44 = por %p42, %p43
      %p46 = scmp.ne.s32.totalorder %s29, %s45
      %p47 = scmp.eq.s32.totalorder %s21, 0
      %p48 = por %p46, %p47
      %s49 = sadd.s32 %s15, 1
      %s50 = smul.u32 %s49, 16
      %p51 = scmp.lt.s32.totalorder %s50, 125
      %s52 = scalar_select %p51, %s50, 125
      %s53 = sadd.s32 %s22, 1
      %s54 = smul.u32 %s53, 16
      %p55 = scmp.lt.s32.totalorder %s54, 125
      %s56 = scalar_select %p55, %s54, 125
      %s57 = ssub.s32 %s52, %s56
      %p58 = scmp.eq.s32.totalorder %s57, 0
      %s60 = sadd.s32 %s59, 1
      %s61 = scalar_select %p58, %s59, %s60
      %p64 = pneg %p58
      %p65 = scmp.eq.s32.totalorder %s15, 7
      %p66 = por %p64, %p65
      %p67 = scmp.ne.s32.totalorder %s59, %s62
      %p68 = scmp.eq.s32.totalorder %s15, 0
      %p69 = por %p67, %p68
      %p70 = scmp.ne.s32.totalorder %s59, %s62
      %p71 = scmp.eq.s32.totalorder %s20, 7
      %p72 = por %p70, %p71
      %p73 = scmp.ne.s32.totalorder %s62, %s63
      %p74 = scmp.eq.s32.totalorder %s20, 0
      %p75 = por %p73, %p74
      %p76 = scmp.ne.s32.totalorder %s62, %s63
      %p77 = scmp.eq.s32.totalorder %s21, 7
      %p78 = por %p76, %p77
      %p80 = scmp.ne.s32.totalorder %s63, %s79
      %p81 = scmp.eq.s32.totalorder %s21, 0
      %p82 = por %p80, %p81
      %s84 = sadd.s32 %s83, 1
      %p87 = scmp.eq.s32.totalorder %s15, 7
      %p88 = scmp.ne.s32.totalorder %s83, %s85
      %p89 = scmp.eq.s32.totalorder %s15, 0
      %p90 = por %p88, %p89
      %p91 = scmp.ne.s32.totalorder %s83, %s85
      %p92 = scmp.eq.s32.totalorder %s20, 7
      %p93 = por %p91, %p92
      %p94 = scmp.ne.s32.totalorder %s85, %s86
      %p95 = scmp.eq.s32.totalorder %s20, 0
      %p96 = por %p94, %p95
      %p97 = scmp.ne.s32.totalorder %s85, %s86
      %p98 = scmp.eq.s32.totalorder %s21, 7
      %p99 = por %p97, %p98
      %p101 = scmp.ne.s32.totalorder %s86, %s100
      %p102 = scmp.eq.s32.totalorder %s21, 0
      %p103 = por %p101, %p102
      %s104 = ssub.s32 %s15, %s22
      %p105 = scmp.eq.s32.totalorder %s104, 0
      %s107 = sadd.s32 %s106, 1
      %s108 = scalar_select %p105, %s106, %s107
      %p111 = pneg %p105
      %p112 = scmp.eq.s32.totalorder %s15, 7
      %p113 = por %p111, %p112
      %p114 = scmp.ne.s32.totalorder %s106, %s109
      %p115 = scmp.eq.s32.totalorder %s15, 0
      %p116 = por %p114, %p115
      %p117 = scmp.ne.s32.totalorder %s106, %s109
      %p118 = scmp.eq.s32.totalorder %s20, 7
      %p119 = por %p117, %p118
      %p120 = scmp.ne.s32.totalorder %s109, %s110
      %p121 = scmp.eq.s32.totalorder %s20, 0
      %p122 = por %p120, %p121
      %p123 = scmp.ne.s32.totalorder %s109, %s110
      %p124 = scmp.eq.s32.totalorder %s21, 7
      %p125 = por %p123, %p124
      %p127 = scmp.ne.s32.totalorder %s110, %s126
      %p128 = scmp.eq.s32.totalorder %s21, 0
      %p129 = por %p127, %p128
      %p130 = scmp.le.s32.totalorder 1, %s15
      %p131 = scmp.lt.s32.totalorder %s15, 9
      %p132 = pnand %p130, %p131
      %p133 = pneg %p132
      // Predicated region
      $region9: #{tpu_custom_call.1} parent=5 // pred_check
        _
      $region10: #{tpu_custom_call.1} parent=5 // pred_check_branch
        %135 = sbr.rel (%p132) target = $region12
      $region11: #{tpu_custom_call.1} parent=5 // pred_region
        %s136 = ssub.s32 %s15, 1
        // Predicated region
        $region13: #{tpu_custom_call.1} parent=11 // pred_check
          %p137 = pneg %p96
        $region14: #{tpu_custom_call.1} parent=11 // pred_check_branch
          %139 = sbr.rel (%p137) target = $region16
        $region15: #{tpu_custom_call.1} parent=11 // pred_region
          _
        $region16: #{tpu_custom_call.1} parent=11 // pred_fallthru
          _
      $region12: #{tpu_custom_call.1} parent=5 // pred_fallthru
        _
      %p140 = scmp.lt.s32.totalorder %s15, 8
      // Predicated region
      $region17: #{tpu_custom_call.1} parent=5 // pred_check
        %p141 = pneg %p140
      $region18: #{tpu_custom_call.1} parent=5 // pred_check_branch
        %143 = sbr.rel (%p141) target = $region20
      $region19: #{tpu_custom_call.1} parent=5 // pred_region
        // Predicated region
        $region21: #{tpu_custom_call.1} parent=19 // pred_check
          %p144 = pneg %p35
        $region22: #{tpu_custom_call.1} parent=19 // pred_check_branch
          %146 = sbr.rel (%p144) target = $region24
        $region23: #{tpu_custom_call.1} parent=19 // pred_region
          %s147 = sand.u32 %s25, 1
          %s148 = scalar_lea.sflag [#allocation4], %s147
          %s149 = sand.u32 %s25, 1
          %s150 = smul.addr %s149, 128
          %s151 = scalar_lea.vmem [#allocation3], %s150
          %s152 = smul.u32 16, %s15
          %s153 = ssub.s32 126, %s152
          %p154 = scmp.lt.s32.totalorder %s153, 16
          %s155 = scalar_select %p154, %s153, 16
          %s156 = smul.u32 128, %s155
          %s158 = ssub.s32 2048, %s156
          %159 = vsyncadd %s148, %s158
          %p160 = scmp.ne.s32.totalorder 0, %s156
          %s161 = smul.addr %s152, 128
          %s162 = scalar_lea.hbm %s0, %s161
          %s163 = smul.u32 8, %s155
          %s164 = sshll.u32 %s151, 4
          %s165 = int_to_ptr.vmem [resolvable:$true] %s164
          %s166 = sshll.u32 %s163, 4
          %170 = dma.hbm_to_vmem [thread:$0]  (%p160), %s162, %s166, %s165, %s148, 128, 128, 8
        $region24: #{tpu_custom_call.1} parent=19 // pred_fallthru
          _
        // Predicated region
        $region25: #{tpu_custom_call.1} parent=19 // pred_check
          %p171 = pneg %p69
        $region26: #{tpu_custom_call.1} parent=19 // pred_check_branch
          %173 = sbr.rel (%p171) target = $region28
        $region27: #{tpu_custom_call.1} parent=19 // pred_region
          %s174 = sand.u32 %s59, 1
          %s175 = scalar_lea.sflag [#allocation6], %s174
          %s176 = sand.u32 %s59, 1
          %s177 = smul.addr %s176, 8
          %s178 = scalar_lea.vmem [#allocation5], %s177
          %s179 = sadd.s32 %s15, 1
          %s180 = smul.u32 %s179, 16
          %p181 = scmp.lt.s32.totalorder %s180, 125
          %s182 = scalar_select %p181, %s180, 125
          %s184 = ssub.s32 128, 128
          %185 = vsyncadd %s175, %s184
          %s186 = smul.addr %s182, 128
          %s187 = scalar_lea.hbm %s1, %s186
          %s189 = sshll.u32 %s178, 4
          %s190 = int_to_ptr.vmem [resolvable:$true] %s189
          %192 = dma.hbm_to_vmem [thread:$0]  %s187, 128, %s190, %s175
        $region28: #{tpu_custom_call.1} parent=19 // pred_fallthru
          _
      $region20: #{tpu_custom_call.1} parent=5 // pred_fallthru
        _
      %p193 = scmp.le.s32.totalorder 1, %s15
      %p194 = scmp.lt.s32.totalorder %s15, 9
      %p195 = pnand %p193, %p194
      %p196 = pneg %p195
      // Predicated region
      $region29: #{tpu_custom_call.1} parent=5 // pred_check
        _
      $region30: #{tpu_custom_call.1} parent=5 // pred_check_branch
        %198 = sbr.rel (%p195) target = $region32
      $region31: #{tpu_custom_call.1} parent=5 // pred_region
        %s199 = ssub.s32 %s15, 1
        %s200 = sand.u32 %s28, 1
        %s201 = scalar_lea.sflag [#allocation4], %s200
        %s202 = sand.u32 %s28, 1
        %s203 = smul.addr %s202, 128
        %s204 = scalar_lea.vmem [#allocation3], %s203
        // Predicated region
        $region33: #{tpu_custom_call.1} parent=31 // pred_check
          %p205 = pneg %p41
        $region34: #{tpu_custom_call.1} parent=31 // pred_check_branch
          %207 = sbr.rel (%p205) target = $region36
        $region35: #{tpu_custom_call.1} parent=31 // pred_region
          %208 = dma.done %s201, 2048
        $region36: #{tpu_custom_call.1} parent=31 // pred_fallthru
          _
        %s209 = sand.u32 %s62, 1
        %s210 = scalar_lea.sflag [#allocation6], %s209
        %s211 = sand.u32 %s62, 1
        %s212 = smul.addr %s211, 8
        %s213 = scalar_lea.vmem [#allocation5], %s212
        // Predicated region
        $region37: #{tpu_custom_call.1} parent=31 // pred_check
          %p214 = pneg %p75
        $region38: #{tpu_custom_call.1} parent=31 // pred_check_branch
          %216 = sbr.rel (%p214) target = $region40
        $region39: #{tpu_custom_call.1} parent=31 // pred_region
          %217 = dma.done %s210, 128
        $region40: #{tpu_custom_call.1} parent=31 // pred_fallthru
          _
        %s218 = sand.u32 %s28, 1
        %s219 = scalar_lea.sflag [#allocation4], %s218
        %s220 = sand.u32 %s28, 1
        %s221 = smul.addr %s220, 128
        %s222 = scalar_lea.vmem [#allocation3], %s221
        %p223 = pneg %p41
        %p224 = pneg %p38
        %s225 = sand.u32 %s62, 1
        %s226 = scalar_lea.sflag [#allocation6], %s225
        %s227 = sand.u32 %s62, 1
        %s228 = smul.addr %s227, 8
        %s229 = scalar_lea.vmem [#allocation5], %s228
        %p230 = pneg %p75
        %p231 = pneg %p72
        %p232 = pneg %p96
        %p233 = pneg %p93
        %p234 = pneg %p122
        %p235 = pneg %p119
        %s236 = sand.u32 %s109, 1
        %s237 = sand.u32 %s109, 1
        %s238 = smul.addr %s237, 128
        %s239 = scalar_lea.vmem [#allocation7], %s238
        %s240 = smul.u32 16, %s20
        %s241 = ssub.s32 126, %s240
        %p242 = scmp.lt.s32.totalorder %s241, 16
        %s243 = scalar_select %p242, %s241, 16
        %s244 = smul.u32 128, %s243
        %s245 = sadd.s32 %s20, 1
        %s246 = smul.u32 %s245, 16
        %p247 = scmp.lt.s32.totalorder %s246, 125
        %s248 = scalar_select %p247, %s246, 125
        %s249 = smul.u32 16, %s20
        %s250 = ssub.s32 126, %s249
        %p251 = scmp.lt.s32.totalorder %s250, 16
        %s252 = scalar_select %p251, %s250, 16
        %s253 = smul.u32 128, %s252
        %v254 = vld [vmem:[%s2] sm:$0xff]
        %v255 = vld [vmem:[%s2 + $0x8] sm:$0xff]
        %v256 = vld [vmem:[%s2 + $0x10] sm:$0xff]
        %v257 = vld [vmem:[%s2 + $0x18] sm:$0xff]
        %v258 = vld [vmem:[%s2 + $0x20] sm:$0xff]
        %v259 = vld [vmem:[%s2 + $0x28] sm:$0xff]
        %v260 = vld [vmem:[%s2 + $0x30] sm:$0xff]
        %v261 = vld [vmem:[%s2 + $0x38] sm:$0xff]
        %v262 = vld [vmem:[%s2 + $0x40] sm:$0xff]
        %v263 = vld [vmem:[%s2 + $0x48] sm:$0xff]
        %v264 = vld [vmem:[%s2 + $0x50] sm:$0xff]
        %v265 = vld [vmem:[%s2 + $0x58] sm:$0xff]
        %v266 = vld [vmem:[%s2 + $0x60] sm:$0xff]
        %v267 = vld [vmem:[%s2 + $0x68] sm:$0xff]
        %v268 = vld [vmem:[%s2 + $0x70] sm:$0xff]
        %v269 = vld [vmem:[%s2 + $0x78] sm:$0xff]
        %v270 = vld [vmem:[%s204 + $0x78] sm:$0xff]
        %271 = vst [vmem:[#allocation2] sm:$0xff] %v270
        %v272 = vld [vmem:[%s213] sm:$0xff]
        %273 = vst [vmem:[#allocation2 + $0x8] sm:$0xff] %v272
        %v274 = vld [vmem:[%s204] sm:$0xff]
        %v275 = vld [vmem:[%s204 + $0x8] sm:$0xff]
        %v276 = vld [vmem:[%s204 + $0x10] sm:$0xff]
        %v277 = vld [vmem:[%s204 + $0x18] sm:$0xff]
        %v278 = vld [vmem:[%s204 + $0x20] sm:$0xff]
        %v279 = vld [vmem:[%s204 + $0x28] sm:$0xff]
        %v280 = vld [vmem:[%s204 + $0x30] sm:$0xff]
        %v281 = vld [vmem:[%s204 + $0x38] sm:$0xff]
        %v282 = vld [vmem:[%s204 + $0x40] sm:$0xff]
        %v283 = vld [vmem:[%s204 + $0x48] sm:$0xff]
        %v284 = vld [vmem:[%s204 + $0x50] sm:$0xff]
        %v285 = vld [vmem:[%s204 + $0x58] sm:$0xff]
        %v286 = vld [vmem:[%s204 + $0x60] sm:$0xff]
        %v287 = vld [vmem:[%s204 + $0x68] sm:$0xff]
        %v288 = vld [vmem:[%s204 + $0x70] sm:$0xff]
        %v289 = vld [vmem:[%s204 + $0x1] sm:$0xff]
        %v290 = vld [vmem:[%s204 + $0x9] sm:$0xff]
        %v291 = vld [vmem:[%s204 + $0x11] sm:$0xff]
        %v292 = vld [vmem:[%s204 + $0x19] sm:$0xff]
        %v293 = vld [vmem:[%s204 + $0x21] sm:$0xff]
        %v294 = vld [vmem:[%s204 + $0x29] sm:$0xff]
        %v295 = vld [vmem:[%s204 + $0x31] sm:$0xff]
        %v296 = vld [vmem:[%s204 + $0x39] sm:$0xff]
        %v297 = vld [vmem:[%s204 + $0x41] sm:$0xff]
        %v298 = vld [vmem:[%s204 + $0x49] sm:$0xff]
        %v299 = vld [vmem:[%s204 + $0x51] sm:$0xff]
        %v300 = vld [vmem:[%s204 + $0x59] sm:$0xff]
        %v301 = vld [vmem:[%s204 + $0x61] sm:$0xff]
        %v302 = vld [vmem:[%s204 + $0x69] sm:$0xff]
        %v303 = vld [vmem:[%s204 + $0x71] sm:$0xff]
        %v304 = vmul.f32 %v274, %v289
        %v305 = vmul.f32 %v275, %v290
        %v306 = vmul.f32 %v276, %v291
        %v307 = vmul.f32 %v277, %v292
        %v308 = vmul.f32 %v278, %v293
        %v309 = vmul.f32 %v279, %v294
        %v310 = vmul.f32 %v280, %v295
        %v311 = vmul.f32 %v281, %v296
        %v312 = vmul.f32 %v282, %v297
        %v313 = vmul.f32 %v283, %v298
        %v314 = vmul.f32 %v284, %v299
        %v315 = vmul.f32 %v285, %v300
        %v316 = vmul.f32 %v286, %v301
        %v317 = vmul.f32 %v287, %v302
        %v318 = vmul.f32 %v288, %v303
        %319 = vmatprep.subr.mxu0 0.0
        %320 = vmatpush1.msra.mxu0 %v269
        %321 = vmatprep.subr.mxu0 0.0
        %322 = vmatpush1.msra.mxu0 %v268
        %323 = vmatprep.subr.mxu0 0.0
        %324 = vmatpush1.msra.mxu0 %v267
        %325 = vmatprep.subr.mxu0 0.0
        %326 = vmatpush1.msra.mxu0 %v266
        %327 = vmatprep.subr.mxu0 0.0
        %328 = vmatpush1.msra.mxu0 %v265
        %329 = vmatprep.subr.mxu0 0.0
        %330 = vmatpush1.msra.mxu0 %v264
        %331 = vmatprep.subr.mxu0 0.0
        %332 = vmatpush1.msra.mxu0 %v263
        %333 = vmatprep.subr.mxu0 0.0
        %334 = vmatpush1.msra.mxu0 %v262
        %335 = vmatprep.subr.mxu0 0.0
        %336 = vmatpush1.msra.mxu0 %v261
        %337 = vmatprep.subr.mxu0 0.0
        %338 = vmatpush1.msra.mxu0 %v260
        %339 = vmatprep.subr.mxu0 0.0
        %340 = vmatpush1.msra.mxu0 %v259
        %341 = vmatprep.subr.mxu0 0.0
        %342 = vmatpush1.msra.mxu0 %v258
        %343 = vmatprep.subr.mxu0 0.0
        %344 = vmatpush1.msra.mxu0 %v257
        %345 = vmatprep.subr.mxu0 0.0
        %346 = vmatpush1.msra.mxu0 %v256
        %347 = vmatprep.subr.mxu0 0.0
        %348 = vmatpush1.msra.mxu0 %v255
        %349 = vmatprep.subr.mxu0 0.0
        %350 = vmatpush1.msra.mxu0 %v254
        %351 = vmatprep.subr.mxu0 0.0
        %352 = vmatpush2.msra.mxu0 0.0
        %353 = vmatprep.subr.mxu0 0.0
        %354 = vmatpush2.msra.mxu0 0.0
        %355 = vmatprep.subr.mxu0 0.0
        %356 = vmatpush2.msra.mxu0 0.0
        %357 = vmatprep.subr.mxu0 0.0
        %358 = vmatpush2.msra.mxu0 0.0
        %359 = vmatprep.subr.mxu0 0.0
        %360 = vmatpush2.msra.mxu0 0.0
        %361 = vmatprep.subr.mxu0 0.0
        %362 = vmatpush2.msra.mxu0 0.0
        %363 = vmatprep.subr.mxu0 0.0
        %364 = vmatpush2.msra.mxu0 0.0
        %365 = vmatprep.subr.mxu0 0.0
        %366 = vmatpush2.msra.mxu0 0.0
        %367 = vmatprep.subr.mxu0 0.0
        %368 = vmatpush2.msra.mxu0 0.0
        %369 = vmatprep.subr.mxu0 0.0
        %370 = vmatpush2.msra.mxu0 0.0
        %371 = vmatprep.subr.mxu0 0.0
        %372 = vmatpush2.msra.mxu0 0.0
        %373 = vmatprep.subr.mxu0 0.0
        %374 = vmatpush2.msra.mxu0 0.0
        %375 = vmatprep.subr.mxu0 0.0
        %376 = vmatpush2.msra.mxu0 0.0
        %377 = vmatprep.subr.mxu0 0.0
        %378 = vmatpush2.msra.mxu0 0.0
        %379 = vmatprep.subr.mxu0 0.0
        %380 = vmatpush2.msra.mxu0 0.0
        %381 = vmatprep.subr.mxu0 0.0
        %382 = vmatpush2.msra.mxu0 0.0
        %383 = vmatprep.mubr.f32.mxu0 0.0
        %384 = vmatmul.mubr.f32.gmra.mxu0 %v304
        %v385 = vpop.f32.mrf.mxu0
        %v386 = vadd.f32 0.0, %v385
        %v387 = vpop.f32.mrf.mxu0
        %388 = vmatprep.mubr.f32.mxu0 0.0
        %389 = vmatmul.mubr.f32.gmra.mxu0 %v305
        %v390 = vpop.f32.mrf.mxu0
        %v391 = vadd.f32 0.0, %v390
        %v392 = vpop.f32.mrf.mxu0
        %393 = vmatprep.mubr.f32.mxu0 0.0
        %394 = vmatmul.mubr.f32.gmra.mxu0 %v306
        %v395 = vpop.f32.mrf.mxu0
        %v396 = vadd.f32 0.0, %v395
        %v397 = vpop.f32.mrf.mxu0
        %398 = vmatprep.mubr.f32.mxu0 0.0
        %399 = vmatmul.mubr.f32.gmra.mxu0 %v307
        %v400 = vpop.f32.mrf.mxu0
        %v401 = vadd.f32 0.0, %v400
        %v402 = vpop.f32.mrf.mxu0
        %403 = vmatprep.mubr.f32.mxu0 0.0
        %404 = vmatmul.mubr.f32.gmra.mxu0 %v308
        %v405 = vpop.f32.mrf.mxu0
        %v406 = vadd.f32 0.0, %v405
        %v407 = vpop.f32.mrf.mxu0
        %408 = vmatprep.mubr.f32.mxu0 0.0
        %409 = vmatmul.mubr.f32.gmra.mxu0 %v309
        %v410 = vpop.f32.mrf.mxu0
        %v411 = vadd.f32 0.0, %v410
        %v412 = vpop.f32.mrf.mxu0
        %413 = vmatprep.mubr.f32.mxu0 0.0
        %414 = vmatmul.mubr.f32.gmra.mxu0 %v310
        %v415 = vpop.f32.mrf.mxu0
        %v416 = vadd.f32 0.0, %v415
        %v417 = vpop.f32.mrf.mxu0
        %418 = vmatprep.mubr.f32.mxu0 0.0
        %419 = vmatmul.mubr.f32.gmra.mxu0 %v311
        %v420 = vpop.f32.mrf.mxu0
        %v421 = vadd.f32 0.0, %v420
        %v422 = vpop.f32.mrf.mxu0
        %423 = vmatprep.mubr.f32.mxu0 0.0
        %424 = vmatmul.mubr.f32.gmra.mxu0 %v312
        %v425 = vpop.f32.mrf.mxu0
        %v426 = vadd.f32 0.0, %v425
        %v427 = vpop.f32.mrf.mxu0
        %428 = vmatprep.mubr.f32.mxu0 0.0
        %429 = vmatmul.mubr.f32.gmra.mxu0 %v313
        %v430 = vpop.f32.mrf.mxu0
        %v431 = vadd.f32 0.0, %v430
        %v432 = vpop.f32.mrf.mxu0
        %433 = vmatprep.mubr.f32.mxu0 0.0
        %434 = vmatmul.mubr.f32.gmra.mxu0 %v314
        %v435 = vpop.f32.mrf.mxu0
        %v436 = vadd.f32 0.0, %v435
        %v437 = vpop.f32.mrf.mxu0
        %438 = vmatprep.mubr.f32.mxu0 0.0
        %439 = vmatmul.mubr.f32.gmra.mxu0 %v315
        %v440 = vpop.f32.mrf.mxu0
        %v441 = vadd.f32 0.0, %v440
        %v442 = vpop.f32.mrf.mxu0
        %443 = vmatprep.mubr.f32.mxu0 0.0
        %444 = vmatmul.mubr.f32.gmra.mxu0 %v316
        %v445 = vpop.f32.mrf.mxu0
        %v446 = vadd.f32 0.0, %v445
        %v447 = vpop.f32.mrf.mxu0
        %448 = vmatprep.mubr.f32.mxu0 0.0
        %449 = vmatmul.mubr.f32.gmra.mxu0 %v317
        %v450 = vpop.f32.mrf.mxu0
        %v451 = vadd.f32 0.0, %v450
        %v452 = vpop.f32.mrf.mxu0
        %453 = vmatprep.mubr.f32.mxu0 0.0
        %454 = vmatmul.mubr.f32.gmra.mxu0 %v318
        %v455 = vpop.f32.mrf.mxu0
        %v456 = vadd.f32 0.0, %v455
        %v457 = vpop.f32.mrf.mxu0
        %458 = vdwg.mxu0
        %vm459 = vcmask 7168
        %460 = vst.msk [vmem:[%s239] sm:$0xff] %vm459, %v386
        %461 = vst.msk [vmem:[%s239 + $0x8] sm:$0xff] %vm459, %v391
        %462 = vst.msk [vmem:[%s239 + $0x10] sm:$0xff] %vm459, %v396
        %463 = vst.msk [vmem:[%s239 + $0x18] sm:$0xff] %vm459, %v401
        %464 = vst.msk [vmem:[%s239 + $0x20] sm:$0xff] %vm459, %v406
        %465 = vst.msk [vmem:[%s239 + $0x28] sm:$0xff] %vm459, %v411
        %466 = vst.msk [vmem:[%s239 + $0x30] sm:$0xff] %vm459, %v416
        %467 = vst.msk [vmem:[%s239 + $0x38] sm:$0xff] %vm459, %v421
        %468 = vst.msk [vmem:[%s239 + $0x40] sm:$0xff] %vm459, %v426
        %469 = vst.msk [vmem:[%s239 + $0x48] sm:$0xff] %vm459, %v431
        %470 = vst.msk [vmem:[%s239 + $0x50] sm:$0xff] %vm459, %v436
        %471 = vst.msk [vmem:[%s239 + $0x58] sm:$0xff] %vm459, %v441
        %472 = vst.msk [vmem:[%s239 + $0x60] sm:$0xff] %vm459, %v446
        %473 = vst.msk [vmem:[%s239 + $0x68] sm:$0xff] %vm459, %v451
        %474 = vst.msk [vmem:[%s239 + $0x70] sm:$0xff] %vm459, %v456
        %v475 = vld [vmem:[#allocation2] sm:$0xff]
        %v476 = vld [vmem:[#allocation2 + $0x1] sm:$0xff]
        %v477 = vmul.f32 %v475, %v476
        %478 = vmatprep.subr.mxu0 0.0
        %479 = vmatpush1.msra.mxu0 %v269
        %480 = vmatprep.subr.mxu0 0.0
        %481 = vmatpush1.msra.mxu0 %v268
        %482 = vmatprep.subr.mxu0 0.0
        %483 = vmatpush1.msra.mxu0 %v267
        %484 = vmatprep.subr.mxu0 0.0
        %485 = vmatpush1.msra.mxu0 %v266
        %486 = vmatprep.subr.mxu0 0.0
        %487 = vmatpush1.msra.mxu0 %v265
        %488 = vmatprep.subr.mxu0 0.0
        %489 = vmatpush1.msra.mxu0 %v264
        %490 = vmatprep.subr.mxu0 0.0
        %491 = vmatpush1.msra.mxu0 %v263
        %492 = vmatprep.subr.mxu0 0.0
        %493 = vmatpush1.msra.mxu0 %v262
        %494 = vmatprep.subr.mxu0 0.0
        %495 = vmatpush1.msra.mxu0 %v261
        %496 = vmatprep.subr.mxu0 0.0
        %497 = vmatpush1.msra.mxu0 %v260
        %498 = vmatprep.subr.mxu0 0.0
        %499 = vmatpush1.msra.mxu0 %v259
        %500 = vmatprep.subr.mxu0 0.0
        %501 = vmatpush1.msra.mxu0 %v258
        %502 = vmatprep.subr.mxu0 0.0
        %503 = vmatpush1.msra.mxu0 %v257
        %504 = vmatprep.subr.mxu0 0.0
        %505 = vmatpush1.msra.mxu0 %v256
        %506 = vmatprep.subr.mxu0 0.0
        %507 = vmatpush1.msra.mxu0 %v255
        %508 = vmatprep.subr.mxu0 0.0
        %509 = vmatpush1.msra.mxu0 %v254
        %510 = vmatprep.subr.mxu0 0.0
        %511 = vmatpush2.msra.mxu0 0.0
        %512 = vmatprep.subr.mxu0 0.0
        %513 = vmatpush2.msra.mxu0 0.0
        %514 = vmatprep.subr.mxu0 0.0
        %515 = vmatpush2.msra.mxu0 0.0
        %516 = vmatprep.subr.mxu0 0.0
        %517 = vmatpush2.msra.mxu0 0.0
        %518 = vmatprep.subr.mxu0 0.0
        %519 = vmatpush2.msra.mxu0 0.0
        %520 = vmatprep.subr.mxu0 0.0
        %521 = vmatpush2.msra.mxu0 0.0
        %522 = vmatprep.subr.mxu0 0.0
        %523 = vmatpush2.msra.mxu0 0.0
        %524 = vmatprep.subr.mxu0 0.0
        %525 = vmatpush2.msra.mxu0 0.0
        %526 = vmatprep.subr.mxu0 0.0
        %527 = vmatpush2.msra.mxu0 0.0
        %528 = vmatprep.subr.mxu0 0.0
        %529 = vmatpush2.msra.mxu0 0.0
        %530 = vmatprep.subr.mxu0 0.0
        %531 = vmatpush2.msra.mxu0 0.0
        %532 = vmatprep.subr.mxu0 0.0
        %533 = vmatpush2.msra.mxu0 0.0
        %534 = vmatprep.subr.mxu0 0.0
        %535 = vmatpush2.msra.mxu0 0.0
        %536 = vmatprep.subr.mxu0 0.0
        %537 = vmatpush2.msra.mxu0 0.0
        %538 = vmatprep.subr.mxu0 0.0
        %539 = vmatpush2.msra.mxu0 0.0
        %540 = vmatprep.subr.mxu0 0.0
        %541 = vmatpush2.msra.mxu0 0.0
        %542 = vmatprep.mubr.f32.mxu0 0.0
        %543 = vmatmul.mubr.f32.gmra.mxu0 %v477
        %v544 = vpop.f32.mrf.mxu0
        %v545 = vadd.f32 0.0, %v544
        %v546 = vpop.f32.mrf.mxu0
        %547 = vdwg.mxu0
        %548 = vst.msk [vmem:[%s239 + $0x78] sm:$0xff] %vm459, %v545
        %s549 = sand.u32 %s109, 1
        %s550 = sand.u32 %s109, 1
        %s551 = smul.addr %s550, 128
        %s552 = scalar_lea.vmem [#allocation7], %s551
        // Predicated region
        $region41: #{tpu_custom_call.1} parent=31 // pred_check
          %p553 = pneg %p119
        $region42: #{tpu_custom_call.1} parent=31 // pred_check_branch
          %555 = sbr.rel (%p553) target = $region44
        $region43: #{tpu_custom_call.1} parent=31 // pred_region
          %s556 = smul.u32 16, %s20
          %s557 = ssub.s32 126, %s556
          %p558 = scmp.lt.s32.totalorder %s557, 16
          %s559 = scalar_select %p558, %s557, 16
          %s560 = smul.u32 128, %s559
          %p561 = scmp.ne.s32.totalorder 0, %s560
          %s562 = smul.addr %s556, 8
          %s563 = scalar_lea.vmem %s3, %s562
          // Predicated region
          $region45: #{tpu_custom_call.1} parent=43 // pred_check
            %p564 = pneg %p561
          $region46: #{tpu_custom_call.1} parent=43 // pred_check_branch
            %566 = sbr.rel (%p564) target = $region48
          $region47: #{tpu_custom_call.1} parent=43 // pred_region
            // Predicated region
            $region49: #{tpu_custom_call.1} parent=47 // pred_check
              _
            $region50: #{tpu_custom_call.1} parent=47 // pred_check_branch
              %568 = sbr.rel (0) target = $region52
            $region51: #{tpu_custom_call.1} parent=47 // pred_region
              // Predicated region
              $region71: #{tpu_custom_call.1} parent=51 // pred_check
                _
              $region72: #{tpu_custom_call.1} parent=51 // pred_check_branch
                %648 = sbr.rel (0) target = $region74
              $region73: #{tpu_custom_call.1} parent=51 // pred_region
                %s649 = sshrl.u32 %s559, 4
                // While loop
                $region75: #{tpu_custom_call.1} parent=73 // loop_pre_header
                  _
                $region76: #{tpu_custom_call.1} parent=73 // loop_header
                  %s651 = sphi 0, %s653
                  %p652 = scmp.ge.s32.totalorder %s651, %s649
                  %s656 = sphi 0, %s693
                  %s657 = sphi %s552, %s696
                  %s658 = sphi %s563, %s697
                $region77: #{tpu_custom_call.1} parent=73 // loop_header_branch
                  %655 = sbr.rel (%p652) target = $region81
                $region78: #{tpu_custom_call.1} parent=73 // loop_body
                  %v659 = vld [vmem:[%s657] sm:$0xff]
                  %660 = vst [vmem:[%s658] sm:$0xff] %v659
                  %v661 = vld [vmem:[%s657 + $0x8] sm:$0xff]
                  %662 = vst [vmem:[%s658 + $0x8] sm:$0xff] %v661
                  %v663 = vld [vmem:[%s657 + $0x10] sm:$0xff]
                  %664 = vst [vmem:[%s658 + $0x10] sm:$0xff] %v663
                  %v665 = vld [vmem:[%s657 + $0x18] sm:$0xff]
                  %666 = vst [vmem:[%s658 + $0x18] sm:$0xff] %v665
                  %v667 = vld [vmem:[%s657 + $0x20] sm:$0xff]
                  %668 = vst [vmem:[%s658 + $0x20] sm:$0xff] %v667
                  %v669 = vld [vmem:[%s657 + $0x28] sm:$0xff]
                  %670 = vst [vmem:[%s658 + $0x28] sm:$0xff] %v669
                  %v671 = vld [vmem:[%s657 + $0x30] sm:$0xff]
                  %672 = vst [vmem:[%s658 + $0x30] sm:$0xff] %v671
                  %v673 = vld [vmem:[%s657 + $0x38] sm:$0xff]
                  %674 = vst [vmem:[%s658 + $0x38] sm:$0xff] %v673
                  %v675 = vld [vmem:[%s657 + $0x40] sm:$0xff]
                  %676 = vst [vmem:[%s658 + $0x40] sm:$0xff] %v675
                  %v677 = vld [vmem:[%s657 + $0x48] sm:$0xff]
                  %678 = vst [vmem:[%s658 + $0x48] sm:$0xff] %v677
                  %v679 = vld [vmem:[%s657 + $0x50] sm:$0xff]
                  %680 = vst [vmem:[%s658 + $0x50] sm:$0xff] %v679
                  %v681 = vld [vmem:[%s657 + $0x58] sm:$0xff]
                  %682 = vst [vmem:[%s658 + $0x58] sm:$0xff] %v681
                  %v683 = vld [vmem:[%s657 + $0x60] sm:$0xff]
                  %684 = vst [vmem:[%s658 + $0x60] sm:$0xff] %v683
                  %v685 = vld [vmem:[%s657 + $0x68] sm:$0xff]
                  %686 = vst [vmem:[%s658 + $0x68] sm:$0xff] %v685
                  %v687 = vld [vmem:[%s657 + $0x70] sm:$0xff]
                  %688 = vst [vmem:[%s658 + $0x70] sm:$0xff] %v687
                  %v689 = vld [vmem:[%s657 + $0x78] sm:$0xff]
                  %690 = vst [vmem:[%s658 + $0x78] sm:$0xff] %v689
                  %s691 = sadd.s32 1, %s656
                  %p692 = scmp.ge.s32.totalorder %s691, %s649
                  %s693 = scalar_select %p692, 0, %s691
                  %s694 = smul.u32 %s693, 128
                  %s695 = smul.u32 %s693, 128
                  %s696 = scalar_lea.vmem %s552, %s694 [#allocation7]
                  %s697 = scalar_lea.vmem %s563, %s695
                $region79: #{tpu_custom_call.1} parent=73 // loop_footer
                  %s653 = sadd.s32 %s651, 1
                $region80: #{tpu_custom_call.1} parent=73 // loop_footer_branch
                  %650 = sbr.rel target = $region76
                $region81: #{tpu_custom_call.1} parent=73 // loop_exit
                  _
                %s698 = sshrl.u32 %s559, 4
                %s699 = sand.u32 %s559, 15
                %s700 = smul.u32 %s698, 16
                %s701 = smul.u32 8, %s700
                %s702 = scalar_lea.vmem %s552, %s701 [#allocation7]
                %s703 = smul.u32 8, %s700
                %s704 = scalar_lea.vmem %s563, %s703
                // While loop
                $region82: #{tpu_custom_call.1} parent=73 // loop_pre_header
                  _
                $region83: #{tpu_custom_call.1} parent=73 // loop_header
                  %s706 = sphi 0, %s708
                  %p707 = scmp.ge.s32.totalorder %s706, %s699
                  %s711 = sphi 0, %s718
                  %s712 = sphi %s702, %s721
                  %s713 = sphi %s704, %s722
                $region84: #{tpu_custom_call.1} parent=73 // loop_header_branch
                  %710 = sbr.rel (%p707) target = $region88
                $region85: #{tpu_custom_call.1} parent=73 // loop_body
                  %v714 = vld [vmem:[%s712] sm:$0xff]
                  %715 = vst [vmem:[%s713] sm:$0xff] %v714
                  %s716 = sadd.s32 1, %s711
                  %p717 = scmp.ge.s32.totalorder %s716, %s699
                  %s718 = scalar_select %p717, 0, %s716
                  %s719 = smul.u32 %s718, 8
                  %s720 = smul.u32 %s718, 8
                  %s721 = scalar_lea.vmem %s702, %s719 [#allocation7]
                  %s722 = scalar_lea.vmem %s704, %s720
                $region86: #{tpu_custom_call.1} parent=73 // loop_footer
                  %s708 = sadd.s32 %s706, 1
                $region87: #{tpu_custom_call.1} parent=73 // loop_footer_branch
                  %705 = sbr.rel target = $region83
                $region88: #{tpu_custom_call.1} parent=73 // loop_exit
                  _
              $region74: #{tpu_custom_call.1} parent=51 // pred_fallthru
                _
              // Predicated region
              $region89: #{tpu_custom_call.1} parent=51 // pred_check
                _
              $region90: #{tpu_custom_call.1} parent=51 // pred_check_branch
                %724 = sbr.rel target = $region92
              $region91: #{tpu_custom_call.1} parent=51 // pred_region
                _
              $region92: #{tpu_custom_call.1} parent=51 // pred_fallthru
                _
            $region52: #{tpu_custom_call.1} parent=47 // pred_fallthru
              _
            // Predicated region
            $region53: #{tpu_custom_call.1} parent=47 // pred_check
              _
            $region54: #{tpu_custom_call.1} parent=47 // pred_check_branch
              %570 = sbr.rel target = $region56
            $region55: #{tpu_custom_call.1} parent=47 // pred_region
              %s572 = ssub.s32 256, 1
              %s573 = sshrl.u32 %s559, 4
              // While loop
              $region57: #{tpu_custom_call.1} parent=55 // loop_pre_header
                _
              $region58: #{tpu_custom_call.1} parent=55 // loop_header
                %s575 = sphi 0, %s577
                %p576 = scmp.ge.s32.totalorder %s575, %s573
                %s580 = sphi 0, %s617
                %s581 = sphi %s552, %s620
                %s582 = sphi %s563, %s621
              $region59: #{tpu_custom_call.1} parent=55 // loop_header_branch
                %579 = sbr.rel (%p576) target = $region63
              $region60: #{tpu_custom_call.1} parent=55 // loop_body
                %v583 = vld [vmem:[%s581] sm:%s572]
                %584 = vst [vmem:[%s582] sm:%s572] %v583
                %v585 = vld [vmem:[%s581 + $0x8] sm:%s572]
                %586 = vst [vmem:[%s582 + $0x8] sm:%s572] %v585
                %v587 = vld [vmem:[%s581 + $0x10] sm:%s572]
                %588 = vst [vmem:[%s582 + $0x10] sm:%s572] %v587
                %v589 = vld [vmem:[%s581 + $0x18] sm:%s572]
                %590 = vst [vmem:[%s582 + $0x18] sm:%s572] %v589
                %v591 = vld [vmem:[%s581 + $0x20] sm:%s572]
                %592 = vst [vmem:[%s582 + $0x20] sm:%s572] %v591
                %v593 = vld [vmem:[%s581 + $0x28] sm:%s572]
                %594 = vst [vmem:[%s582 + $0x28] sm:%s572] %v593
                %v595 = vld [vmem:[%s581 + $0x30] sm:%s572]
                %596 = vst [vmem:[%s582 + $0x30] sm:%s572] %v595
                %v597 = vld [vmem:[%s581 + $0x38] sm:%s572]
                %598 = vst [vmem:[%s582 + $0x38] sm:%s572] %v597
                %v599 = vld [vmem:[%s581 + $0x40] sm:%s572]
                %600 = vst [vmem:[%s582 + $0x40] sm:%s572] %v599
                %v601 = vld [vmem:[%s581 + $0x48] sm:%s572]
                %602 = vst [vmem:[%s582 + $0x48] sm:%s572] %v601
                %v603 = vld [vmem:[%s581 + $0x50] sm:%s572]
                %604 = vst [vmem:[%s582 + $0x50] sm:%s572] %v603
                %v605 = vld [vmem:[%s581 + $0x58] sm:%s572]
                %606 = vst [vmem:[%s582 + $0x58] sm:%s572] %v605
                %v607 = vld [vmem:[%s581 + $0x60] sm:%s572]
                %608 = vst [vmem:[%s582 + $0x60] sm:%s572] %v607
                %v609 = vld [vmem:[%s581 + $0x68] sm:%s572]
                %610 = vst [vmem:[%s582 + $0x68] sm:%s572] %v609
                %v611 = vld [vmem:[%s581 + $0x70] sm:%s572]
                %612 = vst [vmem:[%s582 + $0x70] sm:%s572] %v611
                %v613 = vld [vmem:[%s581 + $0x78] sm:%s572]
                %614 = vst [vmem:[%s582 + $0x78] sm:%s572] %v613
                %s615 = sadd.s32 1, %s580
                %p616 = scmp.ge.s32.totalorder %s615, %s573
                %s617 = scalar_select %p616, 0, %s615
                %s618 = smul.u32 %s617, 128
                %s619 = smul.u32 %s617, 128
                %s620 = scalar_lea.vmem %s552, %s618 [#allocation7]
                %s621 = scalar_lea.vmem %s563, %s619
              $region61: #{tpu_custom_call.1} parent=55 // loop_footer
                %s577 = sadd.s32 %s575, 1
              $region62: #{tpu_custom_call.1} parent=55 // loop_footer_branch
                %574 = sbr.rel target = $region58
              $region63: #{tpu_custom_call.1} parent=55 // loop_exit
                _
              %s622 = sshrl.u32 %s559, 4
              %s623 = sand.u32 %s559, 15
              %s624 = smul.u32 %s622, 16
              %s625 = smul.u32 8, %s624
              %s626 = scalar_lea.vmem %s552, %s625 [#allocation7]
              %s627 = smul.u32 8, %s624
              %s628 = scalar_lea.vmem %s563, %s627
              // While loop
              $region64: #{tpu_custom_call.1} parent=55 // loop_pre_header
                _
              $region65: #{tpu_custom_call.1} parent=55 // loop_header
                %s630 = sphi 0, %s632
                %p631 = scmp.ge.s32.totalorder %s630, %s623
                %s635 = sphi 0, %s642
                %s636 = sphi %s626, %s645
                %s637 = sphi %s628, %s646
              $region66: #{tpu_custom_call.1} parent=55 // loop_header_branch
                %634 = sbr.rel (%p631) target = $region70
              $region67: #{tpu_custom_call.1} parent=55 // loop_body
                %v638 = vld [vmem:[%s636] sm:%s572]
                %639 = vst [vmem:[%s637] sm:%s572] %v638
                %s640 = sadd.s32 1, %s635
                %p641 = scmp.ge.s32.totalorder %s640, %s623
                %s642 = scalar_select %p641, 0, %s640
                %s643 = smul.u32 %s642, 8
                %s644 = smul.u32 %s642, 8
                %s645 = scalar_lea.vmem %s626, %s643 [#allocation7]
                %s646 = scalar_lea.vmem %s628, %s644
              $region68: #{tpu_custom_call.1} parent=55 // loop_footer
                %s632 = sadd.s32 %s630, 1
              $region69: #{tpu_custom_call.1} parent=55 // loop_footer_branch
                %629 = sbr.rel target = $region65
              $region70: #{tpu_custom_call.1} parent=55 // loop_exit
                _
            $region56: #{tpu_custom_call.1} parent=47 // pred_fallthru
              _
          $region48: #{tpu_custom_call.1} parent=43 // pred_fallthru
            _
          %725 = vnop
        $region44: #{tpu_custom_call.1} parent=31 // pred_fallthru
          _
      $region32: #{tpu_custom_call.1} parent=5 // pred_fallthru
        _
      %p726 = scmp.le.s32.totalorder 2, %s15
      // Predicated region
      $region93: #{tpu_custom_call.1} parent=5 // pred_check
        %p727 = pneg %p726
      $region94: #{tpu_custom_call.1} parent=5 // pred_check_branch
        %729 = sbr.rel (%p727) target = $region96
      $region95: #{tpu_custom_call.1} parent=5 // pred_region
        %s730 = ssub.s32 %s15, 2
        // Predicated region
        $region97: #{tpu_custom_call.1} parent=95 // pred_check
          %p731 = pneg %p125
        $region98: #{tpu_custom_call.1} parent=95 // pred_check_branch
          %733 = sbr.rel (%p731) target = $region100
        $region99: #{tpu_custom_call.1} parent=95 // pred_region
          %s734 = sand.u32 %s110, 1
          %s735 = sand.u32 %s110, 1
          %s736 = smul.addr %s735, 128
          %s737 = scalar_lea.vmem [#allocation7], %s736
        $region100: #{tpu_custom_call.1} parent=95 // pred_fallthru
          _
      $region96: #{tpu_custom_call.1} parent=5 // pred_fallthru
        _
    $region6: #{tpu_custom_call.1} parent=1 // loop_footer
      %s19 = sadd.s32 1, %s15
    $region7: #{tpu_custom_call.1} parent=1 // loop_footer_branch
      %14 = sbr.rel target = $region3
    $region8: #{tpu_custom_call.1} parent=1 // loop_exit
      _
    %738 = vsyncpa [#allocation4], 1
    %s739 = scalar_lea.sflag [#allocation4], 1
    %740 = vsyncpa %s739, 1
    %741 = vsyncpa [#allocation6], 1
    %s742 = scalar_lea.sflag [#allocation6], 1
    %743 = vsyncpa %s742, 1

</llo_original>
